<compile_context>
chip_gen: v5e
topology: v5e:2x2
jax: 0.10.0
libtpu: 0.0.40
codegen_flags: <defaults>
</compile_context>

<pallas_src>
import functools

import jax
import jax.numpy as jnp
from jax import lax
from jax.experimental import pallas as pl
from jax.experimental.pallas import tpu as pltpu


def _cdiv(a, b):
    return -(-a // b)


def _round_up(a, b):
    return _cdiv(a, b) * b


def _vmem_physical_bytes():
    try:
        info = pltpu.get_tpu_info()
        for attr in ("vmem_capacity_bytes", "vmem_bytes", "vmem_size_bytes"):
            v = getattr(info, attr, None)
            if v:
                return int(v)
    except Exception:
        pass
    return 64 << 20  # conservative default: v7x per-TensorCore VMEM


def _is_big_vmem_chip():
    # 128 MiB VMEM (v5e / v6e) vs 64 MiB per TensorCore (v7x).
    try:
        kind = jax.devices()[0].device_kind.lower()
        if "v7" in kind:
            return False
    except Exception:
        pass
    return _vmem_physical_bytes() >= (96 << 20)


def _primal_general_update_kernel(*refs, tau, lambda_rof, halo_rows, halo_cols,
                                  has_row_halo, has_col_halo, compute_dtype):
    refs = list(refs)
    x_ref = refs.pop(0)
    y_ref = refs.pop(0)
    y0_halo_ref = refs.pop(0) if has_row_halo else None
    y1_halo_ref = refs.pop(0) if has_col_halo else None
    obs_ref = refs.pop(0)
    o_ref = refs.pop(0)

    cdt = compute_dtype
    y0 = y_ref[0].astype(cdt)                       # (tile_m, tile_n)
    y1 = y_ref[1].astype(cdt)                       # (tile_m, tile_n)
    tm, tn = y0.shape

    # ---- backward divergence, row (sublane) direction ------------------------
    #   d_h[r, c] = y0[r, c] - y0[r-1, c]   (zero previous row at global row 0)
    y0_up = pltpu.roll(y0, 1, 0)                    # row r <- y0[r-1]; row 0 wraps
    if has_row_halo:
        i = pl.program_id(0)
        prev_row = y0_halo_ref[halo_rows - 1:halo_rows, :].astype(cdt)  # (1, tn)
        prev_row = prev_row * (i > 0).astype(cdt)   # zero at top boundary
    else:
        prev_row = jnp.zeros((1, tn), cdt)
    row0 = lax.broadcasted_iota(jnp.int32, (tm, 1), 0) == 0             # (tm, 1)
    d_h = y0 - jnp.where(row0, prev_row, y0_up)

    # ---- backward divergence, column (lane) direction -------------------------
    #   d_v[r, c] = y1[r, c] - y1[r, c-1]   (zero previous col at global col 0)
    y1_left = pltpu.roll(y1, 1, 1)                  # col c <- y1[:, c-1]; col 0 wraps
    if has_col_halo:
        j = pl.program_id(1)
        prev_col = y1_halo_ref[:, halo_cols - 1:halo_cols].astype(cdt)  # (tm, 1)
        prev_col = prev_col * (j > 0).astype(cdt)   # zero at left boundary
    else:
        prev_col = jnp.zeros((tm, 1), cdt)
    col0 = lax.broadcasted_iota(jnp.int32, (1, tn), 1) == 0             # (1, tn)
    d_v = y1 - jnp.where(col0, prev_col, y1_left)

    # ---- primal update (tau, lambda_rof folded in as compile-time scalars) -----
    lam_tau = lambda_rof * tau
    inv_denom = 1.0 / (1.0 + lam_tau)
    out = (x_ref[...].astype(cdt) + tau * (d_h + d_v)
           + lam_tau * obs_ref[...].astype(cdt)) * inv_denom
    o_ref[...] = out.astype(o_ref.dtype)


def primal_general_update(x, y, img_obs, *, lambda_rof, tau,
                          tile_m=None, tile_n=None):
    """(x + tau * div(y) + lambda_rof*tau*img_obs) / (1 + lambda_rof*tau).

    Args:
      x:       [1, M, N] primal variable.
      y:       [2, M, N] dual variable.
      img_obs: [1, M, N] observed image.
    Returns:
      [1, M, N] updated primal variable (dtype of x).
    """
    if x.ndim != 3 or x.shape[0] != 1:
        raise ValueError(f"x must be [1, M, N], got {x.shape}")
    if y.ndim != 3 or y.shape[0] != 2 or y.shape[1:] != x.shape[1:]:
        raise ValueError(f"y must be [2, M, N], got {y.shape}")
    if img_obs.shape != x.shape:
        raise ValueError(f"img_obs must match x, got {img_obs.shape}")

    _, M, N = x.shape
    dtype = x.dtype
    itemsize = jnp.dtype(dtype).itemsize
    compute_dtype = jnp.promote_types(dtype, jnp.float32)
    cbytes = jnp.dtype(compute_dtype).itemsize
    # Sublane packing granularity: 8 rows (f32), 16 (bf16), 32 (int8/fp8).
    pack = max(8, 32 // itemsize)
    LANE = 128

    # ---- lane-dense padding of N -> unmasked vst stores ------------------------
    n_pad = max(_round_up(N, LANE), LANE)
    if n_pad != N:
        padw = ((0, 0), (0, 0), (0, n_pad - N))
        x = jnp.pad(x, padw)
        y = jnp.pad(y, padw)
        img_obs = jnp.pad(img_obs, padw)

    # ---- generation-aware block sizing -----------------------------------------
    big_vmem = _is_big_vmem_chip()
    target_block_bytes = (4 << 20) if big_vmem else (2 << 20)  # per channel, in f32
    vmem_cap = (96 << 20) if big_vmem else (48 << 20)
    MIN_STEPS = 4  # keep both v7x TensorCores + the software pipeline fed

    if tile_n is None:
        tn = n_pad
    else:
        tn = min(max(_round_up(int(tile_n), LANE), LANE), n_pad)

    if tile_m is None:
        tm = target_block_bytes // max(tn * cbytes, 1)
        tm = max(pack, (tm // pack) * pack)
        tm = min(tm, _round_up(M, pack))
        if _cdiv(M, tm) < MIN_STEPS:
            tm = min(tm, max(pack, _round_up(_cdiv(M, MIN_STEPS), pack)))
    else:
        tm = min(max(_round_up(int(tile_m), pack), pack), _round_up(M, pack))
    grid_m = _cdiv(M, tm)

    if tile_n is None and grid_m < MIN_STEPS and n_pad > LANE:
        lanes = n_pad // LANE
        want = min(lanes, _cdiv(MIN_STEPS, grid_m))
        tn = _cdiv(lanes, want) * LANE
    grid_n = _cdiv(n_pad, tn)

    has_row_halo = grid_m > 1
    has_col_halo = grid_n > 1
    row_blocks_per_tile = tm // pack
    col_blocks_per_tile = tn // LANE

    def chan_spec(c):
        return pl.BlockSpec((None, tm, tn), lambda i, j, c=c: (c, i, j))

    in_specs = [
        chan_spec(0),                                          # x
        pl.BlockSpec((2, tm, tn), lambda i, j: (0, i, j)),     # y (both channels)
    ]
    args = [x, y]
    if has_row_halo:
        # pack-row slab of y[0] whose last row is global row i*tm - 1.
        in_specs.append(pl.BlockSpec(
            (None, pack, tn),
            lambda i, j: (0, jnp.maximum(i * row_blocks_per_tile - 1, 0), j)))
        args.append(y)
    if has_col_halo:
        # 128-lane slab of y[1] whose last column is global col j*tn - 1.
        in_specs.append(pl.BlockSpec(
            (None, tm, LANE),
            lambda i, j: (1, i, jnp.maximum(j * col_blocks_per_tile - 1, 0))))
        args.append(y)
    in_specs.append(chan_spec(0))                              # img_obs
    args.append(img_obs)
    out_spec = chan_spec(0)

    # ---- honest VMEM accounting --------------------------------------------------
    block_elems = tm * tn
    data_bytes = 5 * block_elems * itemsize                    # x, y0, y1, obs, out
    halo_bytes = (pack * tn * itemsize if has_row_halo else 0) \
               + (tm * LANE * itemsize if has_col_halo else 0)
    pipeline_bytes = 2 * (data_bytes + halo_bytes)             # double buffered
    temp_bytes = 6 * block_elems * cbytes                      # roll/select/upcast temps
    vmem_est = pipeline_bytes + temp_bytes + (2 << 20)
    vmem_limit = int(min(max(vmem_est, 32 << 20), vmem_cap))

    kernel = functools.partial(
        _primal_general_update_kernel,
        tau=float(tau), lambda_rof=float(lambda_rof),
        halo_rows=pack, halo_cols=LANE,
        has_row_halo=has_row_halo, has_col_halo=has_col_halo,
        compute_dtype=compute_dtype)

    out = pl.pallas_call(
        kernel,
        out_shape=jax.ShapeDtypeStruct((1, M, n_pad), dtype),
        grid=(grid_m, grid_n),
        in_specs=in_specs,
        out_specs=out_spec,
        compiler_params=pltpu.CompilerParams(
            dimension_semantics=("parallel", "parallel"),
            vmem_limit_bytes=vmem_limit,
        ),
    )(*args)

    if n_pad != N:
        out = out[:, :, :N]
    return out


class PrimalGeneralUpdate:
    """Mirrors the PyTorch module: holds (lambda_rof, tau), applies the update."""

    def __init__(self, lambda_rof, tau):
        self.lambda_rof = float(lambda_rof)
        self.tau = float(tau)

    def __call__(self, x, y, img_obs):
        return primal_general_update(
            x, y, img_obs, lambda_rof=self.lambda_rof, tau=self.tau)


# --------------------------- pure-JAX reference --------------------------- #
def _backward_divergence_ref(y):
    y0 = y[0].astype(jnp.float32)
    y1 = y[1].astype(jnp.float32)
    z0 = jnp.concatenate(
        [jnp.zeros((1, y0.shape[1]), y0.dtype), y0[:-1, :]], axis=0)
    z1 = jnp.concatenate(
        [jnp.zeros((y1.shape[0], 1), y1.dtype), y1[:, :-1]], axis=1)
    return (y0 - z0) + (y1 - z1)


def _primal_general_update_ref(x, y, img_obs, lambda_rof, tau):
    div = _backward_divergence_ref(y)[None]
    return (x.astype(jnp.float32) + tau * div
            + lambda_rof * tau * img_obs.astype(jnp.float32)) / (1.0 + lambda_rof * tau)


if __name__ == "__main__":
    key = jax.random.PRNGKey(0)
    k1, k2, k3 = jax.random.split(key, 3)
    lambda_rof, tau = 7.0, 0.02
    update = PrimalGeneralUpdate(lambda_rof, tau)

    # Case A: small lane-aligned image, auto tiling (row halo, grid ~(2, 1)).
    M, N = 16, 128
    x = jax.random.normal(k1, (1, M, N), dtype=jnp.float32)
    y = jax.random.normal(k2, (2, M, N), dtype=jnp.float32)
    obs = jax.random.normal(k3, (1, M, N), dtype=jnp.float32)
    out = jax.block_until_ready(update(x, y, obs))
    ref = _primal_general_update_ref(x, y, obs, lambda_rof, tau)
    assert out.shape == (1, M, N)
    assert jnp.allclose(out, ref, atol=1e-5, rtol=1e-5), float(
        jnp.max(jnp.abs(out - ref)))

    # Case B: M not a multiple of the forced tile -> cdiv grid + masked last block.
    M2, N2 = 20, 128
    x2 = jax.random.normal(k1, (1, M2, N2), dtype=jnp.float32)
    y2 = jax.random.normal(k2, (2, M2, N2), dtype=jnp.float32)
    obs2 = jax.random.normal(k3, (1, M2, N2), dtype=jnp.float32)
    out2 = jax.block_until_ready(primal_general_update(
        x2, y2, obs2, lambda_rof=lambda_rof, tau=tau, tile_m=8))
    ref2 = _primal_general_update_ref(x2, y2, obs2, lambda_rof, tau)
    assert jnp.allclose(out2, ref2, atol=1e-5, rtol=1e-5)

    # Case C: lane (column) tiling -> column-halo path, grid (1, 4).
    M3, N3 = 8, 512
    x3 = jax.random.normal(k1, (1, M3, N3), dtype=jnp.float32)
    y3 = jax.random.normal(k2, (2, M3, N3), dtype=jnp.float32)
    obs3 = jax.random.normal(k3, (1, M3, N3), dtype=jnp.float32)
    out3 = jax.block_until_ready(primal_general_update(
        x3, y3, obs3, lambda_rof=lambda_rof, tau=tau, tile_m=8, tile_n=128))
    ref3 = _primal_general_update_ref(x3, y3, obs3, lambda_rof, tau)
    assert jnp.allclose(out3, ref3, atol=1e-5, rtol=1e-5)

    # Case D: both halos + ragged N (padded to 256 inside the wrapper).
    M4, N4 = 24, 200
    x4 = jax.random.normal(k1, (1, M4, N4), dtype=jnp.float32)
    y4 = jax.random.normal(k2, (2, M4, N4), dtype=jnp.float32)
    obs4 = jax.random.normal(k3, (1, M4, N4), dtype=jnp.float32)
    out4 = jax.block_until_ready(primal_general_update(
        x4, y4, obs4, lambda_rof=lambda_rof, tau=tau, tile_m=8, tile_n=128))
    ref4 = _primal_general_update_ref(x4, y4, obs4, lambda_rof, tau)
    assert out4.shape == (1, M4, N4)
    assert jnp.allclose(out4, ref4, atol=1e-5, rtol=1e-5)

    # Case E: bf16 inputs -> f32 internal compute, bf16 store.
    x5, y5, obs5 = (a.astype(jnp.bfloat16) for a in (x, y, obs))
    out5 = jax.block_until_ready(update(x5, y5, obs5))
    ref5 = _primal_general_update_ref(x5, y5, obs5, lambda_rof, tau)
    assert out5.dtype == jnp.bfloat16
    assert jnp.allclose(out5.astype(jnp.float32), ref5, atol=5e-2, rtol=5e-2)

    # Case F: auto tiling with a multi-step row grid (MIN_STEPS enforcement).
    M6, N6 = 1024, 256
    x6 = jax.random.normal(k1, (1, M6, N6), dtype=jnp.float32)
    y6 = jax.random.normal(k2, (2, M6, N6), dtype=jnp.float32)
    obs6 = jax.random.normal(k3, (1, M6, N6), dtype=jnp.float32)
    out6 = jax.block_until_ready(update(x6, y6, obs6))
    ref6 = _primal_general_update_ref(x6, y6, obs6, lambda_rof, tau)
    assert jnp.allclose(out6, ref6, atol=1e-5, rtol=1e-5)

    print("KERNEL_OK")
</pallas_src>

<mosaic_0001>
module attributes {stable_mosaic.version = 11 : i64} {
  func.func @_primal_general_update_kernel(%arg0: i32, %arg1: i32, %arg2: memref<1x8x128xf32, #tpu.memory_space<vmem>>, %arg3: memref<2x8x128xf32, #tpu.memory_space<vmem>>, %arg4: memref<1x8x128xf32, #tpu.memory_space<vmem>>, %arg5: memref<1x8x128xf32, #tpu.memory_space<vmem>>, %arg6: memref<1x8x128xf32, #tpu.memory_space<vmem>>) attributes {dimension_semantics = [#tpu.dimension_semantics<parallel>, #tpu.dimension_semantics<parallel>], iteration_bounds = array<i64: 2, 1>, scalar_prefetch = 0 : i64, scratch_operands = 0 : i64, tpu.core_type = #tpu.core_type<tc>, window_params = [{transform_indices = @transform_0, window_bounds = array<i64: 1, 8, 128>}, {transform_indices = @transform_1, window_bounds = array<i64: 2, 8, 128>}, {transform_indices = @transform_2, window_bounds = array<i64: 1, 8, 128>}, {transform_indices = @transform_3, window_bounds = array<i64: 1, 8, 128>}, {transform_indices = @transform_4, window_bounds = array<i64: 1, 8, 128>}]} {
    %c0 = arith.constant 0 : index
    %c0_0 = arith.constant 0 : index
    %c0_1 = arith.constant 0 : index
    %0 = vector.load %arg3[%c0, %c0_0, %c0_1] : memref<2x8x128xf32, #tpu.memory_space<vmem>>, vector<1x8x128xf32>
    %1 = vector.shape_cast %0 : vector<1x8x128xf32> to vector<8x128xf32>
    %c1 = arith.constant 1 : index
    %c0_2 = arith.constant 0 : index
    %c0_3 = arith.constant 0 : index
    %2 = vector.load %arg3[%c1, %c0_2, %c0_3] : memref<2x8x128xf32, #tpu.memory_space<vmem>>, vector<1x8x128xf32>
    %3 = vector.shape_cast %2 : vector<1x8x128xf32> to vector<8x128xf32>
    %c1_i32 = arith.constant 1 : i32
    %4 = tpu.dynamic_rotate %1 by %c1_i32 dim 0 : vector<8x128xf32>, i32 -> vector<8x128xf32>
    %c0_4 = arith.constant 0 : index
    %c7 = arith.constant 7 : index
    %c0_5 = arith.constant 0 : index
    %5 = vector.load %arg4[%c0_4, %c7, %c0_5] : memref<1x8x128xf32, #tpu.memory_space<vmem>>, vector<1x1x128xf32>
    %6 = vector.shape_cast %5 : vector<1x1x128xf32> to vector<1x128xf32>
    %c0_i32 = arith.constant 0 : i32
    %7 = arith.cmpi sgt, %arg0, %c0_i32 : i32
    %8 = arith.extui %7 : i1 to i32
    %9 = arith.sitofp %8 : i32 to f32
    %10 = vector.broadcast %9 : f32 to vector<1x128xf32>
    %11 = arith.mulf %6, %10 : vector<1x128xf32>
    %12 = tpu.iota {dimensions = array<i32: 0>} : vector<8x1xi32>
    %c0_i32_6 = arith.constant 0 : i32
    %13 = vector.broadcast %c0_i32_6 : i32 to vector<8x1xi32>
    %14 = arith.cmpi eq, %12, %13 : vector<8x1xi32>
    %15 = vector.shape_cast %14 : vector<8x1xi1> to vector<8x1xi1>
    %16 = vector.broadcast %15 : vector<8x1xi1> to vector<8x128xi1>
    %17 = vector.shape_cast %11 : vector<1x128xf32> to vector<1x128xf32>
    %18 = vector.broadcast %17 : vector<1x128xf32> to vector<8x128xf32>
    %19 = arith.select %16, %18, %4 : vector<8x128xi1>, vector<8x128xf32>
    %20 = arith.subf %1, %19 : vector<8x128xf32>
    %c1_i32_7 = arith.constant 1 : i32
    %21 = tpu.dynamic_rotate %3 by %c1_i32_7 dim 1 : vector<8x128xf32>, i32 -> vector<8x128xf32>
    %cst = arith.constant 0.000000e+00 : f32
    %22 = vector.broadcast %cst : f32 to vector<8x1xf32>
    %23 = tpu.iota {dimensions = array<i32: 1>} : vector<1x128xi32>
    %c0_i32_8 = arith.constant 0 : i32
    %24 = vector.broadcast %c0_i32_8 : i32 to vector<1x128xi32>
    %25 = arith.cmpi eq, %23, %24 : vector<1x128xi32>
    %26 = vector.shape_cast %25 : vector<1x128xi1> to vector<1x128xi1>
    %27 = vector.broadcast %26 : vector<1x128xi1> to vector<8x128xi1>
    %28 = vector.shape_cast %22 : vector<8x1xf32> to vector<8x1xf32>
    %29 = vector.broadcast %28 : vector<8x1xf32> to vector<8x128xf32>
    %30 = arith.select %27, %29, %21 : vector<8x128xi1>, vector<8x128xf32>
    %31 = arith.subf %3, %30 : vector<8x128xf32>
    %c0_9 = arith.constant 0 : index
    %c0_10 = arith.constant 0 : index
    %c0_11 = arith.constant 0 : index
    %32 = vector.load %arg2[%c0_9, %c0_10, %c0_11] : memref<1x8x128xf32, #tpu.memory_space<vmem>>, vector<1x8x128xf32>
    %33 = vector.shape_cast %32 : vector<1x8x128xf32> to vector<8x128xf32>
    %34 = arith.addf %20, %31 : vector<8x128xf32>
    %cst_12 = arith.constant 2.000000e-02 : f32
    %35 = vector.broadcast %cst_12 : f32 to vector<8x128xf32>
    %36 = arith.mulf %35, %34 : vector<8x128xf32>
    %37 = arith.addf %33, %36 : vector<8x128xf32>
    %c0_13 = arith.constant 0 : index
    %c0_14 = arith.constant 0 : index
    %c0_15 = arith.constant 0 : index
    %38 = vector.load %arg5[%c0_13, %c0_14, %c0_15] : memref<1x8x128xf32, #tpu.memory_space<vmem>>, vector<1x8x128xf32>
    %39 = vector.shape_cast %38 : vector<1x8x128xf32> to vector<8x128xf32>
    %cst_16 = arith.constant 1.400000e-01 : f32
    %40 = vector.broadcast %cst_16 : f32 to vector<8x128xf32>
    %41 = arith.mulf %40, %39 : vector<8x128xf32>
    %42 = arith.addf %37, %41 : vector<8x128xf32>
    %cst_17 = arith.constant 0.877192974 : f32
    %43 = vector.broadcast %cst_17 : f32 to vector<8x128xf32>
    %44 = arith.mulf %42, %43 : vector<8x128xf32>
    %c0_18 = arith.constant 0 : index
    %c0_19 = arith.constant 0 : index
    %c0_20 = arith.constant 0 : index
    %45 = vector.load %arg6[%c0_18, %c0_19, %c0_20] : memref<1x8x128xf32, #tpu.memory_space<vmem>>, vector<1x8x128xf32>
    %46 = vector.shape_cast %45 : vector<1x8x128xf32> to vector<8x128xf32>
    %47 = vector.shape_cast %44 : vector<8x128xf32> to vector<1x8x128xf32>
    tpu.vector_store %arg6[%c0_18, %c0_19, %c0_20], %47 {strides = array<i32>} : memref<1x8x128xf32, #tpu.memory_space<vmem>>, vector<1x8x128xf32>,
    return
  }
  func.func @transform_0(%arg0: i32, %arg1: i32) -> (i32, i32, i32) {
    %c0_i32 = arith.constant 0 : i32
    %c0_i32_0 = arith.constant 0 : i32
    return %c0_i32, %arg0, %arg1 : i32, i32, i32
  }
  func.func @transform_1(%arg0: i32, %arg1: i32) -> (i32, i32, i32) {
    %c0_i32 = arith.constant 0 : i32
    %c0_i32_0 = arith.constant 0 : i32
    return %c0_i32, %arg0, %arg1 : i32, i32, i32
  }
  func.func @transform_2(%arg0: i32, %arg1: i32) -> (i32, i32, i32) {
    %c1_i32 = arith.constant 1 : i32
    %0 = arith.muli %arg0, %c1_i32 : i32
    %c1_i32_0 = arith.constant 1 : i32
    %1 = arith.subi %0, %c1_i32_0 : i32
    %c0_i32 = arith.constant 0 : i32
    %2 = arith.maxsi %1, %c0_i32 : i32
    %c0_i32_1 = arith.constant 0 : i32
    %c0_i32_2 = arith.constant 0 : i32
    return %c0_i32_1, %2, %arg1 : i32, i32, i32
  }
  func.func @transform_3(%arg0: i32, %arg1: i32) -> (i32, i32, i32) {
    %c0_i32 = arith.constant 0 : i32
    %c0_i32_0 = arith.constant 0 : i32
    return %c0_i32, %arg0, %arg1 : i32, i32, i32
  }
  func.func @transform_4(%arg0: i32, %arg1: i32) -> (i32, i32, i32) {
    %c0_i32 = arith.constant 0 : i32
    %c0_i32_0 = arith.constant 0 : i32
    return %c0_i32, %arg0, %arg1 : i32, i32, i32
  }
}

</mosaic_0001>

<llo_original>
// kernel: tpu_custom_call.1
$region0: #{tpu_custom_call.1}
  #allocation0 [shape = 'u32[]', space=smem, size = 0x4, offset = 0x4, fixed_abs, tag = 'smem constant byte address 0x4 - core index']
  #allocation1 [shape = 'u32[72,128]{1,0:T(1,128)}', space=vmem, size = 0x9000, scoped, tag = 'internal scratch']
  %s0 = inlined_call_operand.hbm [shape: f32[1,16,128], index: 0, kind: input, shape index: {}]
  %s1 = inlined_call_operand.hbm [shape: f32[2,16,128], index: 1, kind: input, shape index: {}]
  %s2 = inlined_call_operand.hbm [shape: f32[2,16,128], index: 2, kind: input, shape index: {}]
  %s3 = inlined_call_operand.hbm [shape: f32[1,16,128], index: 3, kind: input, shape index: {}]
  %s4 = inlined_call_operand.hbm [shape: f32[1,16,128], index: 4, kind: output, shape index: {}]
  %s5 = sld [smem:[#allocation0]]
  $region65: #{tpu_custom_call.1} parent=0
    _
  %s7 = ssub.s32 1, %s5
  %s8 = scalar_select 0, %s7, %s5
  $region1: #{tpu_custom_call.1} parent=0
    #allocation2 [shape = 'u8[8192]{0}', space=vmem, size = 0x2000, scoped, tag = 'input window, operand 0']
    #allocation3 [shape = 's32[2]{0}', space=sflag, size = 0x8, scoped, tag = 'scoped memory for tpu_custom_call.1']
    #allocation4 [shape = 's32[2]{0}', space=sflag, size = 0x8, scoped, tag = 'scoped memory for tpu_custom_call.1']
    #allocation5 [shape = 'u8[16384]{0}', space=vmem, size = 0x4000, scoped, tag = 'input window, operand 1']
    #allocation6 [shape = 's32[2]{0}', space=sflag, size = 0x8, scoped, tag = 'scoped memory for tpu_custom_call.1']
    #allocation7 [shape = 'u8[8192]{0}', space=vmem, size = 0x2000, scoped, tag = 'input window, operand 2']
    #allocation8 [shape = 'u8[8192]{0}', space=vmem, size = 0x2000, scoped, tag = 'input window, operand 3']
    #allocation9 [shape = 's32[2]{0}', space=sflag, size = 0x8, scoped, tag = 'scoped memory for tpu_custom_call.1']
    #allocation10 [shape = 'u8[8192]{0}', space=vmem, size = 0x2000, scoped, tag = 'output window, operand 0']
    %9 = vsyncpa [#allocation3], 0
    %s10 = scalar_lea.sflag [#allocation3], 1
    %11 = vsyncpa %s10, 0
    %12 = vsyncpa [#allocation6], 0
    %s13 = scalar_lea.sflag [#allocation6], 1
    %14 = vsyncpa %s13, 0
    %15 = vsyncpa [#allocation9], 0
    %s16 = scalar_lea.sflag [#allocation9], 1
    %17 = vsyncpa %s16, 0
    %18 = vsyncpa [#allocation4], 0
    %s19 = scalar_lea.sflag [#allocation4], 1
    %20 = vsyncpa %s19, 0
    loop: start=0, step=1, limit=4
    $region2: #{tpu_custom_call.1} parent=1 // loop_pre_header
      _
    $region3: #{tpu_custom_call.1} parent=1 // loop_header
      %s22 = sphi 0, %s26
      %p23 = scmp.ge.s32.totalorder %s22, 4
      %s29 = sphi 0, %s41
      %s30 = sphi 0, %s37
      %s31 = sphi 0, %s29
      %s32 = sphi 0, %s30
      %s33 = sphi 0, %s31
      %s34 = sphi 0, %s32
      %s46 = sphi 0, %s48
      %s49 = sphi 0, %s46
      %s50 = sphi 0, %s49
      %s66 = sphi 0, %s50
      %s74 = sphi 0, %s76
      %s77 = sphi 0, %s74
      %s78 = sphi 0, %s77
      %s94 = sphi 0, %s78
      %s108 = sphi 0, %s110
      %s111 = sphi 0, %s108
      %s112 = sphi 0, %s111
      %s128 = sphi 0, %s112
      %s136 = sphi 0, %s138
      %s139 = sphi 0, %s136
      %s140 = sphi 0, %s139
      %s156 = sphi 0, %s140
      %s164 = sphi 0, %s166
      %s167 = sphi 0, %s164
      %s168 = sphi 0, %s167
      %s184 = sphi 0, %s168
    $region4: #{tpu_custom_call.1} parent=1 // loop_header_branch
      %25 = sbr.rel (%p23) target = $region8
    $region5: #{tpu_custom_call.1} parent=1 // loop_body
      %s27 = ssub.s32 %s22, 1
      %s28 = ssub.s32 %s22, 2
      %s35 = sadd.s32 1, %s30
      %p36 = scmp.ge.s32.totalorder %s35, 1
      %s37 = scalar_select %p36, 0, %s35
      %s38 = sadd.s32 1, %s29
      %s39 = scalar_select %p36, %s38, %s29
      %p40 = scmp.ge.s32.totalorder %s39, 2
      %s41 = scalar_select %p40, 0, %s39
      %s42 = ssub.s32 %s29, %s41
      %s43 = ssub.s32 %s30, %s37
      %s44 = sor.u32 %s42, %s43
      %p45 = scmp.eq.s32.totalorder %s44, 0
      %s47 = sadd.s32 %s46, 1
      %s48 = scalar_select %p45, %s46, %s47
      %p51 = pneg %p45
      %p52 = scmp.eq.s32.totalorder %s22, 1
      %p53 = por %p51, %p52
      %p54 = scmp.ne.s32.totalorder %s46, %s49
      %p55 = scmp.eq.s32.totalorder %s22, 0
      %p56 = por %p54, %p55
      %p57 = scmp.ne.s32.totalorder %s46, %s49
      %p58 = scmp.eq.s32.totalorder %s27, 1
      %p59 = por %p57, %p58
      %p60 = scmp.ne.s32.totalorder %s49, %s50
      %p61 = scmp.eq.s32.totalorder %s27, 0
      %p62 = por %p60, %p61
      %p63 = scmp.ne.s32.totalorder %s49, %s50
      %p64 = scmp.eq.s32.totalorder %s28, 1
      %p65 = por %p63, %p64
      %p67 = scmp.ne.s32.totalorder %s50, %s66
      %p68 = scmp.eq.s32.totalorder %s28, 0
      %p69 = por %p67, %p68
      %s70 = ssub.s32 %s29, %s41
      %s71 = ssub.s32 %s30, %s37
      %s72 = sor.u32 %s70, %s71
      %p73 = scmp.eq.s32.totalorder %s72, 0
      %s75 = sadd.s32 %s74, 1
      %s76 = scalar_select %p73, %s74, %s75
      %p79 = pneg %p73
      %p80 = scmp.eq.s32.totalorder %s22, 1
      %p81 = por %p79, %p80
      %p82 = scmp.ne.s32.totalorder %s74, %s77
      %p83 = scmp.eq.s32.totalorder %s22, 0
      %p84 = por %p82, %p83
      %p85 = scmp.ne.s32.totalorder %s74, %s77
      %p86 = scmp.eq.s32.totalorder %s27, 1
      %p87 = por %p85, %p86
      %p88 = scmp.ne.s32.totalorder %s77, %s78
      %p89 = scmp.eq.s32.totalorder %s27, 0
      %p90 = por %p88, %p89
      %p91 = scmp.ne.s32.totalorder %s77, %s78
      %p92 = scmp.eq.s32.totalorder %s28, 1
      %p93 = por %p91, %p92
      %p95 = scmp.ne.s32.totalorder %s78, %s94
      %p96 = scmp.eq.s32.totalorder %s28, 0
      %p97 = por %p95, %p96
      %s98 = ssub.s32 %s29, 1
      %p99 = scmp.gt.s32.totalorder %s98, 0
      %s100 = scalar_select %p99, %s98, 0
      %s101 = ssub.s32 %s41, 1
      %p102 = scmp.gt.s32.totalorder %s101, 0
      %s103 = scalar_select %p102, %s101, 0
      %s104 = ssub.s32 %s100, %s103
      %s105 = ssub.s32 %s30, %s37
      %s106 = sor.u32 %s104, %s105
      %p107 = scmp.eq.s32.totalorder %s106, 0
      %s109 = sadd.s32 %s108, 1
      %s110 = scalar_select %p107, %s108, %s109
      %p113 = pneg %p107
      %p114 = scmp.eq.s32.totalorder %s22, 1
      %p115 = por %p113, %p114
      %p116 = scmp.ne.s32.totalorder %s108, %s111
      %p117 = scmp.eq.s32.totalorder %s22, 0
      %p118 = por %p116, %p117
      %p119 = scmp.ne.s32.totalorder %s108, %s111
      %p120 = scmp.eq.s32.totalorder %s27, 1
      %p121 = por %p119, %p120
      %p122 = scmp.ne.s32.totalorder %s111, %s112
      %p123 = scmp.eq.s32.totalorder %s27, 0
      %p124 = por %p122, %p123
      %p125 = scmp.ne.s32.totalorder %s111, %s112
      %p126 = scmp.eq.s32.totalorder %s28, 1
      %p127 = por %p125, %p126
      %p129 = scmp.ne.s32.totalorder %s112, %s128
      %p130 = scmp.eq.s32.totalorder %s28, 0
      %p131 = por %p129, %p130
      %s132 = ssub.s32 %s29, %s41
      %s133 = ssub.s32 %s30, %s37
      %s134 = sor.u32 %s132, %s133
      %p135 = scmp.eq.s32.totalorder %s134, 0
      %s137 = sadd.s32 %s136, 1
      %s138 = scalar_select %p135, %s136, %s137
      %p141 = pneg %p135
      %p142 = scmp.eq.s32.totalorder %s22, 1
      %p143 = por %p141, %p142
      %p144 = scmp.ne.s32.totalorder %s136, %s139
      %p145 = scmp.eq.s32.totalorder %s22, 0
      %p146 = por %p144, %p145
      %p147 = scmp.ne.s32.totalorder %s136, %s139
      %p148 = scmp.eq.s32.totalorder %s27, 1
      %p149 = por %p147, %p148
      %p150 = scmp.ne.s32.totalorder %s139, %s140
      %p151 = scmp.eq.s32.totalorder %s27, 0
      %p152 = por %p150, %p151
      %p153 = scmp.ne.s32.totalorder %s139, %s140
      %p154 = scmp.eq.s32.totalorder %s28, 1
      %p155 = por %p153, %p154
      %p157 = scmp.ne.s32.totalorder %s140, %s156
      %p158 = scmp.eq.s32.totalorder %s28, 0
      %p159 = por %p157, %p158
      %s160 = ssub.s32 %s29, %s41
      %s161 = ssub.s32 %s30, %s37
      %s162 = sor.u32 %s160, %s161
      %p163 = scmp.eq.s32.totalorder %s162, 0
      %s165 = sadd.s32 %s164, 1
      %s166 = scalar_select %p163, %s164, %s165
      %p169 = pneg %p163
      %p170 = scmp.eq.s32.totalorder %s22, 1
      %p171 = por %p169, %p170
      %p172 = scmp.ne.s32.totalorder %s164, %s167
      %p173 = scmp.eq.s32.totalorder %s22, 0
      %p174 = por %p172, %p173
      %p175 = scmp.ne.s32.totalorder %s164, %s167
      %p176 = scmp.eq.s32.totalorder %s27, 1
      %p177 = por %p175, %p176
      %p178 = scmp.ne.s32.totalorder %s167, %s168
      %p179 = scmp.eq.s32.totalorder %s27, 0
      %p180 = por %p178, %p179
      %p181 = scmp.ne.s32.totalorder %s167, %s168
      %p182 = scmp.eq.s32.totalorder %s28, 1
      %p183 = por %p181, %p182
      %p185 = scmp.ne.s32.totalorder %s168, %s184
      %p186 = scmp.eq.s32.totalorder %s28, 0
      %p187 = por %p185, %p186
      %p188 = scmp.le.s32.totalorder 1, %s22
      %p189 = scmp.lt.s32.totalorder %s22, 3
      %p190 = pnand %p188, %p189
      %p191 = pneg %p190
      // Predicated region
      $region9: #{tpu_custom_call.1} parent=5 // pred_check
        _
      $region10: #{tpu_custom_call.1} parent=5 // pred_check_branch
        %193 = sbr.rel (%p190) target = $region12
      $region11: #{tpu_custom_call.1} parent=5 // pred_region
        %s194 = ssub.s32 %s22, 1
      $region12: #{tpu_custom_call.1} parent=5 // pred_fallthru
        _
      %p195 = scmp.lt.s32.totalorder %s22, 2
      // Predicated region
      $region13: #{tpu_custom_call.1} parent=5 // pred_check
        %p196 = pneg %p195
      $region14: #{tpu_custom_call.1} parent=5 // pred_check_branch
        %198 = sbr.rel (%p196) target = $region16
      $region15: #{tpu_custom_call.1} parent=5 // pred_region
        // Predicated region
        $region17: #{tpu_custom_call.1} parent=15 // pred_check
          %p199 = pneg %p56
        $region18: #{tpu_custom_call.1} parent=15 // pred_check_branch
          %201 = sbr.rel (%p199) target = $region20
        $region19: #{tpu_custom_call.1} parent=15 // pred_region
          %s202 = sand.u32 %s46, 1
          %s203 = scalar_lea.sflag [#allocation3], %s202
          %s204 = sand.u32 %s46, 1
          %s205 = smul.addr %s204, 8
          %s206 = scalar_lea.vmem [#allocation2], %s205
          %208 = vsyncadd %s203, 0
          %s209 = sadd.s32 %s30, %s29
          %s210 = smul.addr %s209, 8
          %s211 = scalar_lea.hbm %s0, %s210
          %s213 = sshll.u32 %s211, 4
          %s214 = int_to_ptr.hbm [resolvable:$true] %s213
          %s215 = sshll.u32 %s206, 4
          %s216 = int_to_ptr.vmem [resolvable:$true] %s215
          %218 = dma.hbm_to_vmem [thread:$0]  %s214, 128, %s216, %s203
        $region20: #{tpu_custom_call.1} parent=15 // pred_fallthru
          _
        // Predicated region
        $region21: #{tpu_custom_call.1} parent=15 // pred_check
          %p219 = pneg %p84
        $region22: #{tpu_custom_call.1} parent=15 // pred_check_branch
          %221 = sbr.rel (%p219) target = $region24
        $region23: #{tpu_custom_call.1} parent=15 // pred_region
          %s222 = sand.u32 %s22, 1
          %s223 = scalar_lea.sflag [#allocation6], %s222
          %s224 = sand.u32 %s74, 1
          %s225 = smul.addr %s224, 16
          %s226 = scalar_lea.vmem [#allocation5], %s225
          %228 = vsyncadd %s223, 0
          %s229 = sadd.s32 %s30, %s29
          %s230 = smul.addr %s229, 8
          %s231 = scalar_lea.hbm %s1, %s230
          %s232 = sshll.u32 %s231, 4
          %s233 = int_to_ptr.hbm [resolvable:$true] %s232
          %s234 = sshll.u32 %s226, 4
          %s235 = int_to_ptr.vmem [resolvable:$true] %s234
          %240 = dma.hbm_to_vmem [thread:$0]  %s233, 256, %s235, %s223, 256, 128, 8
        $region24: #{tpu_custom_call.1} parent=15 // pred_fallthru
          _
        // Predicated region
        $region25: #{tpu_custom_call.1} parent=15 // pred_check
          %p241 = pneg %p118
        $region26: #{tpu_custom_call.1} parent=15 // pred_check_branch
          %243 = sbr.rel (%p241) target = $region28
        $region27: #{tpu_custom_call.1} parent=15 // pred_region
          %s244 = sand.u32 %s22, 1
          %s245 = scalar_lea.sflag [#allocation6], %s244
          %s246 = sand.u32 %s108, 1
          %s247 = smul.addr %s246, 8
          %s248 = scalar_lea.vmem [#allocation7], %s247
          %s249 = ssub.s32 %s29, 1
          %p250 = scmp.gt.s32.totalorder %s249, 0
          %s251 = scalar_select %p250, %s249, 0
          %253 = vsyncadd %s245, 0
          %s254 = sadd.s32 %s30, %s251
          %s255 = smul.addr %s254, 8
          %s256 = scalar_lea.hbm %s2, %s255
          %s258 = sshll.u32 %s256, 4
          %s259 = int_to_ptr.hbm [resolvable:$true] %s258
          %s260 = sshll.u32 %s248, 4
          %s261 = int_to_ptr.vmem [resolvable:$true] %s260
          %263 = dma.hbm_to_vmem [thread:$0]  %s259, 128, %s261, %s245
        $region28: #{tpu_custom_call.1} parent=15 // pred_fallthru
          _
        // Predicated region
        $region29: #{tpu_custom_call.1} parent=15 // pred_check
          %p264 = pneg %p146
        $region30: #{tpu_custom_call.1} parent=15 // pred_check_branch
          %266 = sbr.rel (%p264) target = $region32
        $region31: #{tpu_custom_call.1} parent=15 // pred_region
          %s267 = sand.u32 %s136, 1
          %s268 = scalar_lea.sflag [#allocation9], %s267
          %s269 = sand.u32 %s136, 1
          %s270 = smul.addr %s269, 8
          %s271 = scalar_lea.vmem [#allocation8], %s270
          %273 = vsyncadd %s268, 0
          %s274 = sadd.s32 %s30, %s29
          %s275 = smul.addr %s274, 8
          %s276 = scalar_lea.hbm %s3, %s275
          %s278 = sshll.u32 %s276, 4
          %s279 = int_to_ptr.hbm [resolvable:$true] %s278
          %s280 = sshll.u32 %s271, 4
          %s281 = int_to_ptr.vmem [resolvable:$true] %s280
          %283 = dma.hbm_to_vmem [thread:$0]  %s279, 128, %s281, %s268
        $region32: #{tpu_custom_call.1} parent=15 // pred_fallthru
          _
      $region16: #{tpu_custom_call.1} parent=5 // pred_fallthru
        _
      %p284 = scmp.le.s32.totalorder 1, %s22
      %p285 = scmp.lt.s32.totalorder %s22, 3
      %p286 = pnand %p284, %p285
      %p287 = pneg %p286
      // Predicated region
      $region33: #{tpu_custom_call.1} parent=5 // pred_check
        _
      $region34: #{tpu_custom_call.1} parent=5 // pred_check_branch
        %289 = sbr.rel (%p286) target = $region36
      $region35: #{tpu_custom_call.1} parent=5 // pred_region
        %s290 = ssub.s32 %s22, 1
        %s291 = sand.u32 %s49, 1
        %s292 = scalar_lea.sflag [#allocation3], %s291
        %s293 = sand.u32 %s49, 1
        %s294 = smul.addr %s293, 8
        %s295 = scalar_lea.vmem [#allocation2], %s294
        // Predicated region
        $region37: #{tpu_custom_call.1} parent=35 // pred_check
          %p296 = pneg %p62
        $region38: #{tpu_custom_call.1} parent=35 // pred_check_branch
          %298 = sbr.rel (%p296) target = $region40
        $region39: #{tpu_custom_call.1} parent=35 // pred_region
          %300 = dma.done %s292, 128
        $region40: #{tpu_custom_call.1} parent=35 // pred_fallthru
          _
        %s301 = sand.u32 %s27, 1
        %s302 = scalar_lea.sflag [#allocation6], %s301
        %s303 = sand.u32 %s77, 1
        %s304 = smul.addr %s303, 16
        %s305 = scalar_lea.vmem [#allocation5], %s304
        // Predicated region
        $region41: #{tpu_custom_call.1} parent=35 // pred_check
          %p306 = pneg %p90
        $region42: #{tpu_custom_call.1} parent=35 // pred_check_branch
          %308 = sbr.rel (%p306) target = $region44
        $region43: #{tpu_custom_call.1} parent=35 // pred_region
          %310 = dma.done %s302, 256
        $region44: #{tpu_custom_call.1} parent=35 // pred_fallthru
          _
        %s311 = sand.u32 %s27, 1
        %s312 = scalar_lea.sflag [#allocation6], %s311
        %s313 = sand.u32 %s111, 1
        %s314 = smul.addr %s313, 8
        %s315 = scalar_lea.vmem [#allocation7], %s314
        // Predicated region
        $region45: #{tpu_custom_call.1} parent=35 // pred_check
          %p316 = pneg %p124
        $region46: #{tpu_custom_call.1} parent=35 // pred_check_branch
          %318 = sbr.rel (%p316) target = $region48
        $region47: #{tpu_custom_call.1} parent=35 // pred_region
          %320 = dma.done %s312, 128
        $region48: #{tpu_custom_call.1} parent=35 // pred_fallthru
          _
        %s321 = sand.u32 %s139, 1
        %s322 = scalar_lea.sflag [#allocation9], %s321
        %s323 = sand.u32 %s139, 1
        %s324 = smul.addr %s323, 8
        %s325 = scalar_lea.vmem [#allocation8], %s324
        // Predicated region
        $region49: #{tpu_custom_call.1} parent=35 // pred_check
          %p326 = pneg %p152
        $region50: #{tpu_custom_call.1} parent=35 // pred_check_branch
          %328 = sbr.rel (%p326) target = $region52
        $region51: #{tpu_custom_call.1} parent=35 // pred_region
          %330 = dma.done %s322, 128
        $region52: #{tpu_custom_call.1} parent=35 // pred_fallthru
          _
        %s331 = sand.u32 %s49, 1
        %s332 = scalar_lea.sflag [#allocation3], %s331
        %s333 = sand.u32 %s49, 1
        %s334 = smul.addr %s333, 8
        %s335 = scalar_lea.vmem [#allocation2], %s334
        %p336 = pneg %p62
        %p337 = pneg %p59
        %s338 = sand.u32 %s27, 1
        %s339 = scalar_lea.sflag [#allocation6], %s338
        %s340 = sand.u32 %s77, 1
        %s341 = smul.addr %s340, 16
        %s342 = scalar_lea.vmem [#allocation5], %s341
        %p343 = pneg %p90
        %p344 = pneg %p87
        %s345 = sand.u32 %s27, 1
        %s346 = scalar_lea.sflag [#allocation6], %s345
        %s347 = sand.u32 %s111, 1
        %s348 = smul.addr %s347, 8
        %s349 = scalar_lea.vmem [#allocation7], %s348
        %p350 = pneg %p124
        %p351 = pneg %p121
        %s352 = sand.u32 %s139, 1
        %s353 = scalar_lea.sflag [#allocation9], %s352
        %s354 = sand.u32 %s139, 1
        %s355 = smul.addr %s354, 8
        %s356 = scalar_lea.vmem [#allocation8], %s355
        %p357 = pneg %p152
        %p358 = pneg %p149
        %p359 = pneg %p180
        %p360 = pneg %p177
        %s361 = sand.u32 %s167, 1
        %s362 = scalar_lea.sflag [#allocation4], %s361
        %s363 = sand.u32 %s167, 1
        %s364 = smul.addr %s363, 8
        %s365 = scalar_lea.vmem [#allocation10], %s364
        %s366 = ssub.s32 %s31, 1
        %p367 = scmp.gt.s32.totalorder %s366, 0
        %s368 = scalar_select %p367, %s366, 0
        %v369 = vld [vmem:[%s305] sm:$0xff]
        %s370 = scalar_lea.vmem %s305, 8 [#allocation5]
        %v371 = vld [vmem:[%s370] sm:$0xff]
        %v372 = vrot.slane %v369, 7
        %v373 = vld [vmem:[%s315 + $0x7] sm:$0x1]
        %p374 = scmp.gt.s32.totalorder %s31, 0
        %s375 = scalar_select %p374, 1, 0
        %s376 = scvt.s32.f32 %s375
        %v377 = vstv %s376
        %v378 = vmul.f32 %v373, %v377
        %v379 = vlaneseq
        %v380 = vshrl.u32 %v379, 7
        %vm381 = vcmp.eq.s32.totalorder %v380, 0
        %v382 = vsel %vm381, 1, 0
        %vm383 = vcmp.eq.s32.totalorder %v382, 1
        %v384 = vperm.slane %v378, 0
        %v385 = vsel %vm383, %v384, %v372
        %v386 = vsub.f32 %v369, %v385
        %387 = vrot.lane.b32.xlu0 %v371, 1
        %v388 = vpop.permute.xlu0 %387
        %v389 = vlaneseq
        %v390 = vand.u32 %v389, 127
        %vm391 = vcmp.eq.s32.totalorder %v390, 0
        %v392 = vsel %vm391, 1, 0
        %vm393 = vcmp.eq.s32.totalorder %v392, 1
        %v394 = vsel %vm393, 0.0, %v388
        %v395 = vsub.f32 %v371, %v394
        %v396 = vld [vmem:[%s295] sm:$0xff]
        %v397 = vadd.f32 %v386, %v395
        %v398 = vmul.f32 %v397, 0.02
        %v399 = vadd.f32 %v396, %v398
        %v400 = vld [vmem:[%s325] sm:$0xff]
        %v401 = vmul.f32 %v400, 0.14
        %v402 = vadd.f32 %v399, %v401
        %v403 = vmul.f32 %v402, 0.877193
        %404 = vst [vmem:[%s365] sm:$0xff] %v403
        %s405 = sand.u32 %s167, 1
        %s406 = scalar_lea.sflag [#allocation4], %s405
        %s407 = sand.u32 %s167, 1
        %s408 = smul.addr %s407, 8
        %s409 = scalar_lea.vmem [#allocation10], %s408
        // Predicated region
        $region53: #{tpu_custom_call.1} parent=35 // pred_check
          %p410 = pneg %p177
        $region54: #{tpu_custom_call.1} parent=35 // pred_check_branch
          %412 = sbr.rel (%p410) target = $region56
        $region55: #{tpu_custom_call.1} parent=35 // pred_region
          %414 = vsyncadd %s406, 0
          %s415 = sadd.s32 %s32, %s31
          %s416 = smul.addr %s415, 8
          %s417 = scalar_lea.hbm %s4, %s416
          %s419 = sshll.u32 %s409, 4
          %s420 = int_to_ptr.vmem [resolvable:$true] %s419
          %s421 = sshll.u32 %s417, 4
          %s422 = int_to_ptr.hbm [resolvable:$true] %s421
          %424 = dma.vmem_to_hbm [thread:$0]  %s420, 128, %s422, %s406
        $region56: #{tpu_custom_call.1} parent=35 // pred_fallthru
          _
      $region36: #{tpu_custom_call.1} parent=5 // pred_fallthru
        _
      %p425 = scmp.le.s32.totalorder 2, %s22
      // Predicated region
      $region57: #{tpu_custom_call.1} parent=5 // pred_check
        %p426 = pneg %p425
      $region58: #{tpu_custom_call.1} parent=5 // pred_check_branch
        %428 = sbr.rel (%p426) target = $region60
      $region59: #{tpu_custom_call.1} parent=5 // pred_region
        %s429 = ssub.s32 %s22, 2
        // Predicated region
        $region61: #{tpu_custom_call.1} parent=59 // pred_check
          %p430 = pneg %p183
        $region62: #{tpu_custom_call.1} parent=59 // pred_check_branch
          %432 = sbr.rel (%p430) target = $region64
        $region63: #{tpu_custom_call.1} parent=59 // pred_region
          %s433 = sand.u32 %s168, 1
          %s434 = scalar_lea.sflag [#allocation4], %s433
          %s435 = sand.u32 %s168, 1
          %s436 = smul.addr %s435, 8
          %s437 = scalar_lea.vmem [#allocation10], %s436
          %439 = dma.done %s434, 128
        $region64: #{tpu_custom_call.1} parent=59 // pred_fallthru
          _
      $region60: #{tpu_custom_call.1} parent=5 // pred_fallthru
        _
    $region6: #{tpu_custom_call.1} parent=1 // loop_footer
      %s26 = sadd.s32 1, %s22
    $region7: #{tpu_custom_call.1} parent=1 // loop_footer_branch
      %21 = sbr.rel target = $region3
    $region8: #{tpu_custom_call.1} parent=1 // loop_exit
      _
    %440 = vsyncpa [#allocation3], 1
    %s441 = scalar_lea.sflag [#allocation3], 1
    %442 = vsyncpa %s441, 1
    %443 = vsyncpa [#allocation6], 1
    %s444 = scalar_lea.sflag [#allocation6], 1
    %445 = vsyncpa %s444, 1
    %446 = vsyncpa [#allocation9], 1
    %s447 = scalar_lea.sflag [#allocation9], 1
    %448 = vsyncpa %s447, 1
    %449 = vsyncpa [#allocation4], 1
    %s450 = scalar_lea.sflag [#allocation4], 1
    %451 = vsyncpa %s450, 1

</llo_original>
